<compile_context>
chip_gen: v5e
topology: v5e:2x2
jax: 0.10.0
libtpu: 0.0.40
codegen_flags: <defaults>
</compile_context>

<pallas_src>
import functools

import jax
import jax.numpy as jnp
from jax.experimental import pallas as pl
from jax.experimental.pallas import tpu as pltpu


SUBLANE = 8           # sublane granularity for the batch tile
DEFAULT_TILE_B = 256  # 256-512 already reaches ~85% of HBM roofline


def encoder_kernel(x_ref, w1_ref, b1_ref, w2_ref, b2_ref, w3_ref, b3_ref, o_ref):
    # Three fused MXU matmuls. Accumulation, bias add and tanh are always f32
    # (bf16 tanh would be a small extra win on v6e/v7x EUP, but v5e has no
    # bf16 EUP, so keep f32 for a single portable kernel).
    h1 = jnp.tanh(
        jnp.dot(x_ref[...], w1_ref[...], preferred_element_type=jnp.float32)
        + b1_ref[...]
    )
    h2 = jnp.tanh(
        jnp.dot(h1.astype(w2_ref.dtype), w2_ref[...],
                preferred_element_type=jnp.float32)
        + b2_ref[...]
    )
    o_ref[...] = jnp.tanh(
        jnp.dot(h2.astype(w3_ref.dtype), w3_ref[...],
                preferred_element_type=jnp.float32)
        + b3_ref[...]
    ).astype(o_ref.dtype)


@functools.partial(jax.jit, static_argnames=("tile_b", "compute_dtype"))
def encoder_forward(x, w1, b1, w2, b2, w3, b3, *, tile_b=DEFAULT_TILE_B,
                    compute_dtype=jnp.bfloat16):
    """x: (B, input_size). Returns (B, output_size) f32."""
    batch, in_size = x.shape
    hidden = w1.shape[1]
    out_size = w3.shape[1]

    # bf16-in / f32-acc recipe: cast x + weights to the compute dtype; biases
    # stay f32 (they add onto the f32 MXU accumulator).
    x = x.astype(compute_dtype)
    w1 = w1.astype(compute_dtype)
    w2 = w2.astype(compute_dtype)
    w3 = w3.astype(compute_dtype)
    b1 = b1.astype(jnp.float32)
    b2 = b2.astype(jnp.float32)
    b3 = b3.astype(jnp.float32)

    # Batch tiling without any HBM-side padding of x:
    #  - batch <= tile_b: one block spanning the full batch dim (always legal).
    #  - otherwise: fixed tile (multiple of 8); the ragged last block is handled
    #    by Pallas masking (OOB rows read as garbage but are never written).
    if batch <= tile_b:
        tile_b_eff = batch
    else:
        tile_b_eff = max((tile_b // SUBLANE) * SUBLANE, SUBLANE)
    grid = (pl.cdiv(batch, tile_b_eff),)

    # TODO(synk): pipeline_mode=pl.Buffered(3) on the x spec if input DMA is
    # still exposed after these structural fixes (expected <5-10%).
    out = pl.pallas_call(
        encoder_kernel,
        out_shape=jax.ShapeDtypeStruct((batch, out_size), jnp.float32),
        grid=grid,
        in_specs=[
            # x: streamed per batch tile (double-buffered by the pipeline).
            pl.BlockSpec((tile_b_eff, in_size), lambda i: (i, 0)),
            # Weights / biases: constant index_map -> resident in VMEM.
            pl.BlockSpec((in_size, hidden), lambda i: (0, 0)),
            pl.BlockSpec((1, hidden), lambda i: (0, 0)),
            pl.BlockSpec((hidden, hidden), lambda i: (0, 0)),
            pl.BlockSpec((1, hidden), lambda i: (0, 0)),
            pl.BlockSpec((hidden, out_size), lambda i: (0, 0)),
            pl.BlockSpec((1, out_size), lambda i: (0, 0)),
        ],
        # Narrow (tile_b, 5) output block: contiguous per-tile writeback, no
        # lane padding of the output in HBM.
        out_specs=pl.BlockSpec((tile_b_eff, out_size), lambda i: (i, 0)),
        compiler_params=pltpu.CompilerParams(
            dimension_semantics=("parallel",),
        ),
    )(x, w1, b1, w2, b2, w3, b3)

    return out


def init_params(key, input_size, hidden_size, output_size):
    """Deterministic init mirroring nn.Linear shapes (stored as (in, out))."""
    ks = jax.random.split(key, 6)

    def linear(kw, kb, fan_in, fan_out):
        bound = 1.0 / jnp.sqrt(fan_in)
        w = jax.random.uniform(kw, (fan_in, fan_out), jnp.float32, -bound, bound)
        b = jax.random.uniform(kb, (1, fan_out), jnp.float32, -bound, bound)
        return w, b

    w1, b1 = linear(ks[0], ks[1], input_size, hidden_size)
    w2, b2 = linear(ks[2], ks[3], hidden_size, hidden_size)
    w3, b3 = linear(ks[4], ks[5], hidden_size, output_size)
    return w1, b1, w2, b2, w3, b3


def _reference(x, params):
    w1, b1, w2, b2, w3, b3 = params
    return jnp.tanh(jnp.tanh(jnp.tanh(x @ w1 + b1) @ w2 + b2) @ w3 + b3)


if __name__ == "__main__":
    input_size, hidden_size, output_size = 100, 64, 5

    key = jax.random.PRNGKey(0)
    kx, kx2, kp = jax.random.split(key, 3)
    params = init_params(kp, input_size, hidden_size, output_size)

    # Small case: single full-batch block, f32 path for exact parity.
    batch = 8
    x = jax.random.normal(kx, (batch, input_size), jnp.float32)
    out = jax.block_until_ready(
        encoder_forward(x, *params, compute_dtype=jnp.float32))
    ref = _reference(x, params)
    assert out.shape == (batch, output_size)
    assert jnp.allclose(out, ref, atol=1e-5, rtol=1e-5)

    # Ragged multi-tile case: grid = cdiv(500, 256) = 2 with a masked last
    # block, default bf16-in / f32-acc path (looser tolerance).
    batch2 = 500
    x2 = jax.random.normal(kx2, (batch2, input_size), jnp.float32)
    out2 = jax.block_until_ready(encoder_forward(x2, *params))
    ref2 = _reference(x2, params)
    assert out2.shape == (batch2, output_size)
    assert jnp.allclose(out2, ref2, atol=3e-2, rtol=0.0)

    # Same ragged grid, f32 path, tight tolerance (checks the OOB masking).
    out2_f32 = jax.block_until_ready(
        encoder_forward(x2, *params, compute_dtype=jnp.float32))
    assert jnp.allclose(out2_f32, ref2, atol=1e-5, rtol=1e-5)

    print("KERNEL_OK")
</pallas_src>

<mosaic_0001>
module attributes {stable_mosaic.version = 11 : i64} {
  func.func @encoder_kernel(%arg0: i32, %arg1: memref<8x100xf32, #tpu.memory_space<vmem>>, %arg2: memref<100x64xf32, #tpu.memory_space<vmem>>, %arg3: memref<1x64xf32, #tpu.memory_space<vmem>>, %arg4: memref<64x64xf32, #tpu.memory_space<vmem>>, %arg5: memref<1x64xf32, #tpu.memory_space<vmem>>, %arg6: memref<64x5xf32, #tpu.memory_space<vmem>>, %arg7: memref<1x5xf32, #tpu.memory_space<vmem>>, %arg8: memref<8x5xf32, #tpu.memory_space<vmem>>) attributes {dimension_semantics = [#tpu.dimension_semantics<parallel>], iteration_bounds = array<i64: 1>, scalar_prefetch = 0 : i64, scratch_operands = 0 : i64, tpu.core_type = #tpu.core_type<tc>, window_params = [{transform_indices = @transform_0, window_bounds = array<i64: 8, 100>}, {pipeline_mode = #tpu.pipeline_mode<synchronous>, transform_indices = @transform_1, window_bounds = array<i64: 100, 64>}, {pipeline_mode = #tpu.pipeline_mode<synchronous>, transform_indices = @transform_2, window_bounds = array<i64: 1, 64>}, {pipeline_mode = #tpu.pipeline_mode<synchronous>, transform_indices = @transform_3, window_bounds = array<i64: 64, 64>}, {pipeline_mode = #tpu.pipeline_mode<synchronous>, transform_indices = @transform_4, window_bounds = array<i64: 1, 64>}, {pipeline_mode = #tpu.pipeline_mode<synchronous>, transform_indices = @transform_5, window_bounds = array<i64: 64, 5>}, {pipeline_mode = #tpu.pipeline_mode<synchronous>, transform_indices = @transform_6, window_bounds = array<i64: 1, 5>}, {transform_indices = @transform_7, window_bounds = array<i64: 8, 5>}]} {
    %c0 = arith.constant 0 : index
    %c0_0 = arith.constant 0 : index
    %0 = vector.load %arg1[%c0, %c0_0] : memref<8x100xf32, #tpu.memory_space<vmem>>, vector<8x100xf32>
    %c0_1 = arith.constant 0 : index
    %c0_2 = arith.constant 0 : index
    %1 = vector.load %arg2[%c0_1, %c0_2] : memref<100x64xf32, #tpu.memory_space<vmem>>, vector<100x64xf32>
    %cst = arith.constant dense<0.000000e+00> : vector<8x64xf32>
    %2 = tpu.matmul %0, %1, %cst {dimension_numbers = #tpu.dot_dimension_numbers<[1], [0], [0], [1], [0, 0, 1, 1], [], []>} : vector<8x100xf32>, vector<100x64xf32>, vector<8x64xf32> -> vector<8x64xf32>
    %c0_3 = arith.constant 0 : index
    %c0_4 = arith.constant 0 : index
    %3 = vector.load %arg3[%c0_3, %c0_4] : memref<1x64xf32, #tpu.memory_space<vmem>>, vector<1x64xf32>
    %4 = vector.broadcast %3 : vector<1x64xf32> to vector<8x64xf32>
    %5 = arith.addf %2, %4 : vector<8x64xf32>
    %6 = math.tanh %5 : vector<8x64xf32>
    %c0_5 = arith.constant 0 : index
    %c0_6 = arith.constant 0 : index
    %7 = vector.load %arg4[%c0_5, %c0_6] : memref<64x64xf32, #tpu.memory_space<vmem>>, vector<64x64xf32>
    %cst_7 = arith.constant dense<0.000000e+00> : vector<8x64xf32>
    %8 = tpu.matmul %6, %7, %cst_7 {dimension_numbers = #tpu.dot_dimension_numbers<[1], [0], [0], [1], [0, 0, 1, 1], [], []>} : vector<8x64xf32>, vector<64x64xf32>, vector<8x64xf32> -> vector<8x64xf32>
    %c0_8 = arith.constant 0 : index
    %c0_9 = arith.constant 0 : index
    %9 = vector.load %arg5[%c0_8, %c0_9] : memref<1x64xf32, #tpu.memory_space<vmem>>, vector<1x64xf32>
    %10 = vector.broadcast %9 : vector<1x64xf32> to vector<8x64xf32>
    %11 = arith.addf %8, %10 : vector<8x64xf32>
    %12 = math.tanh %11 : vector<8x64xf32>
    %c0_10 = arith.constant 0 : index
    %c0_11 = arith.constant 0 : index
    %13 = vector.load %arg6[%c0_10, %c0_11] : memref<64x5xf32, #tpu.memory_space<vmem>>, vector<64x5xf32>
    %cst_12 = arith.constant dense<0.000000e+00> : vector<8x5xf32>
    %14 = tpu.matmul %12, %13, %cst_12 {dimension_numbers = #tpu.dot_dimension_numbers<[1], [0], [0], [1], [0, 0, 1, 1], [], []>} : vector<8x64xf32>, vector<64x5xf32>, vector<8x5xf32> -> vector<8x5xf32>
    %c0_13 = arith.constant 0 : index
    %c0_14 = arith.constant 0 : index
    %15 = vector.load %arg7[%c0_13, %c0_14] : memref<1x5xf32, #tpu.memory_space<vmem>>, vector<1x5xf32>
    %16 = vector.broadcast %15 : vector<1x5xf32> to vector<8x5xf32>
    %17 = arith.addf %14, %16 : vector<8x5xf32>
    %18 = math.tanh %17 : vector<8x5xf32>
    %c0_15 = arith.constant 0 : index
    %c0_16 = arith.constant 0 : index
    %19 = vector.load %arg8[%c0_15, %c0_16] : memref<8x5xf32, #tpu.memory_space<vmem>>, vector<8x5xf32>
    tpu.vector_store %arg8[%c0_15, %c0_16], %18 {strides = array<i32>} : memref<8x5xf32, #tpu.memory_space<vmem>>, vector<8x5xf32>,
    return
  }
  func.func @transform_0(%arg0: i32) -> (i32, i32) {
    %c0_i32 = arith.constant 0 : i32
    %c0_i32_0 = arith.constant 0 : i32
    return %arg0, %c0_i32 : i32, i32
  }
  func.func @transform_1(%arg0: i32) -> (i32, i32) {
    %c0_i32 = arith.constant 0 : i32
    %c0_i32_0 = arith.constant 0 : i32
    %c0_i32_1 = arith.constant 0 : i32
    return %c0_i32, %c0_i32_0 : i32, i32
  }
  func.func @transform_2(%arg0: i32) -> (i32, i32) {
    %c0_i32 = arith.constant 0 : i32
    %c0_i32_0 = arith.constant 0 : i32
    %c0_i32_1 = arith.constant 0 : i32
    return %c0_i32, %c0_i32_0 : i32, i32
  }
  func.func @transform_3(%arg0: i32) -> (i32, i32) {
    %c0_i32 = arith.constant 0 : i32
    %c0_i32_0 = arith.constant 0 : i32
    %c0_i32_1 = arith.constant 0 : i32
    return %c0_i32, %c0_i32_0 : i32, i32
  }
  func.func @transform_4(%arg0: i32) -> (i32, i32) {
    %c0_i32 = arith.constant 0 : i32
    %c0_i32_0 = arith.constant 0 : i32
    %c0_i32_1 = arith.constant 0 : i32
    return %c0_i32, %c0_i32_0 : i32, i32
  }
  func.func @transform_5(%arg0: i32) -> (i32, i32) {
    %c0_i32 = arith.constant 0 : i32
    %c0_i32_0 = arith.constant 0 : i32
    %c0_i32_1 = arith.constant 0 : i32
    return %c0_i32, %c0_i32_0 : i32, i32
  }
  func.func @transform_6(%arg0: i32) -> (i32, i32) {
    %c0_i32 = arith.constant 0 : i32
    %c0_i32_0 = arith.constant 0 : i32
    %c0_i32_1 = arith.constant 0 : i32
    return %c0_i32, %c0_i32_0 : i32, i32
  }
  func.func @transform_7(%arg0: i32) -> (i32, i32) {
    %c0_i32 = arith.constant 0 : i32
    %c0_i32_0 = arith.constant 0 : i32
    return %arg0, %c0_i32 : i32, i32
  }
}

</mosaic_0001>

<llo_original>
// kernel: encoder_forward.1
$region0: #{encoder_forward.1}
  #allocation0 [shape = 'u32[]', space=smem, size = 0x4, offset = 0x4, fixed_abs, tag = 'smem constant byte address 0x4 - core index']
  #allocation1 [shape = 'u32[72,128]{1,0:T(1,128)}', space=vmem, size = 0x9000, scoped, tag = 'internal scratch']
  %s0 = inlined_call_operand.vmem [shape: f32[8,100], index: 0, kind: input, shape index: {}]
  %s1 = inlined_call_operand.vmem [shape: f32[100,64], index: 1, kind: input, shape index: {}]
  %s2 = inlined_call_operand.vmem [shape: f32[1,64], index: 2, kind: input, shape index: {}]
  %s3 = inlined_call_operand.vmem [shape: f32[64,64], index: 3, kind: input, shape index: {}]
  %s4 = inlined_call_operand.vmem [shape: f32[1,64], index: 4, kind: input, shape index: {}]
  %s5 = inlined_call_operand.vmem [shape: f32[64,5], index: 5, kind: input, shape index: {}]
  %s6 = inlined_call_operand.vmem [shape: f32[1,5], index: 6, kind: input, shape index: {}]
  %s7 = inlined_call_operand.hbm [shape: f32[8,5], index: 7, kind: output, shape index: {}]
  %s8 = sld [smem:[#allocation0]]
  $region38: #{encoder_forward.1} parent=0
    _
  %s10 = ssub.s32 1, %s8
  %s11 = scalar_select 0, %s10, %s8
  $region1: #{encoder_forward.1} parent=0
    #allocation2 [shape = 'u8[4096]{0}', space=vmem, size = 0x1000, scoped, tag = 'output window, operand 0, single buffered']
    #allocation3 [shape = 's32[1]{0}', space=sflag, size = 0x4, scoped, tag = 'scoped memory for encoder_forward.1']
    %12 = vsyncpa [#allocation3], 0
    // Predicated region
    $region2: #{encoder_forward.1} parent=1 // pred_check
      _
    $region3: #{encoder_forward.1} parent=1 // pred_check_branch
      %14 = sbr.rel (0) target = $region5
    $region4: #{encoder_forward.1} parent=1 // pred_region
      _
    $region5: #{encoder_forward.1} parent=1 // pred_fallthru
      _
    // Predicated region
    $region6: #{encoder_forward.1} parent=1 // pred_check
      _
    $region7: #{encoder_forward.1} parent=1 // pred_check_branch
      %16 = sbr.rel (0) target = $region9
    $region8: #{encoder_forward.1} parent=1 // pred_region
      _
    $region9: #{encoder_forward.1} parent=1 // pred_fallthru
      _
    // Predicated region
    $region10: #{encoder_forward.1} parent=1 // pred_check
      _
    $region11: #{encoder_forward.1} parent=1 // pred_check_branch
      %18 = sbr.rel (0) target = $region13
    $region12: #{encoder_forward.1} parent=1 // pred_region
      _
    $region13: #{encoder_forward.1} parent=1 // pred_fallthru
      _
    // Predicated region
    $region14: #{encoder_forward.1} parent=1 // pred_check
      _
    $region15: #{encoder_forward.1} parent=1 // pred_check_branch
      %20 = sbr.rel (0) target = $region17
    $region16: #{encoder_forward.1} parent=1 // pred_region
      _
    $region17: #{encoder_forward.1} parent=1 // pred_fallthru
      _
    // Predicated region
    $region18: #{encoder_forward.1} parent=1 // pred_check
      _
    $region19: #{encoder_forward.1} parent=1 // pred_check_branch
      %22 = sbr.rel (0) target = $region21
    $region20: #{encoder_forward.1} parent=1 // pred_region
      _
    $region21: #{encoder_forward.1} parent=1 // pred_fallthru
      _
    // Predicated region
    $region22: #{encoder_forward.1} parent=1 // pred_check
      _
    $region23: #{encoder_forward.1} parent=1 // pred_check_branch
      %24 = sbr.rel (0) target = $region25
    $region24: #{encoder_forward.1} parent=1 // pred_region
      _
    $region25: #{encoder_forward.1} parent=1 // pred_fallthru
      _
    // Predicated region
    $region26: #{encoder_forward.1} parent=1 // pred_check
      _
    $region27: #{encoder_forward.1} parent=1 // pred_check_branch
      %26 = sbr.rel (0) target = $region29
    $region28: #{encoder_forward.1} parent=1 // pred_region
      _
    $region29: #{encoder_forward.1} parent=1 // pred_fallthru
      _
    %v27 = vld [vmem:[%s0] sm:$0xff]
    %v28 = vld [vmem:[%s1] sm:$0xff]
    %v29 = vld [vmem:[%s1 + $0x8] sm:$0xff]
    %v30 = vld [vmem:[%s1 + $0x10] sm:$0xff]
    %v31 = vld [vmem:[%s1 + $0x18] sm:$0xff]
    %v32 = vld [vmem:[%s1 + $0x20] sm:$0xff]
    %v33 = vld [vmem:[%s1 + $0x28] sm:$0xff]
    %v34 = vld [vmem:[%s1 + $0x30] sm:$0xff]
    %v35 = vld [vmem:[%s1 + $0x38] sm:$0xff]
    %v36 = vld [vmem:[%s1 + $0x40] sm:$0xff]
    %v37 = vld [vmem:[%s1 + $0x48] sm:$0xff]
    %v38 = vld [vmem:[%s1 + $0x50] sm:$0xff]
    %v39 = vld [vmem:[%s1 + $0x58] sm:$0xff]
    %v40 = vld [vmem:[%s1 + $0x60] sm:$0xf]
    %v41 = vld [vmem:[%s2] sm:$0x1]
    %v43 = vperm.slane %v41, 0
    %vm45 = vcmask 818176
    %v47 = vsel %vm45, %v27, 0
    %vm49 = vcmask 1043456
    %v51 = vsel %vm49, %v40, 0
    %53 = vmatpush.msra.mxu0 0.0
    %54 = vmatpush.msra.mxu0 0.0
    %55 = vmatpush.msra.mxu0 0.0
    %56 = vmatpush.msra.mxu0 %v51
    %57 = vmatpush.msra.mxu0 %v39
    %58 = vmatpush.msra.mxu0 %v38
    %59 = vmatpush.msra.mxu0 %v37
    %60 = vmatpush.msra.mxu0 %v36
    %61 = vmatpush.msra.mxu0 %v35
    %62 = vmatpush.msra.mxu0 %v34
    %63 = vmatpush.msra.mxu0 %v33
    %64 = vmatpush.msra.mxu0 %v32
    %65 = vmatpush.msra.mxu0 %v31
    %66 = vmatpush.msra.mxu0 %v30
    %67 = vmatpush.msra.mxu0 %v29
    %68 = vmatpush.msra.mxu0 %v28
    %69 = vmatmul.f32.gmra.mxu0 %v47
    %v70 = vpop.f32.mrf.mxu0
    %v71 = vadd.f32 %v43, %v70
    %72 = vdwg.mxu0
    %v73 = vtanh.pop %v71
    %v74 = vld [vmem:[%s3] sm:$0xff]
    %v75 = vld [vmem:[%s3 + $0x8] sm:$0xff]
    %v76 = vld [vmem:[%s3 + $0x10] sm:$0xff]
    %v77 = vld [vmem:[%s3 + $0x18] sm:$0xff]
    %v78 = vld [vmem:[%s3 + $0x20] sm:$0xff]
    %v79 = vld [vmem:[%s3 + $0x28] sm:$0xff]
    %v80 = vld [vmem:[%s3 + $0x30] sm:$0xff]
    %v81 = vld [vmem:[%s3 + $0x38] sm:$0xff]
    %v82 = vld [vmem:[%s4] sm:$0x1]
    %v84 = vperm.slane %v82, 0
    %vm86 = vcmask 523264
    %v88 = vsel %vm86, %v73, 0
    %90 = vmatpush.msra.mxu0 0.0
    %91 = vmatpush.msra.mxu0 0.0
    %92 = vmatpush.msra.mxu0 0.0
    %93 = vmatpush.msra.mxu0 0.0
    %94 = vmatpush.msra.mxu0 0.0
    %95 = vmatpush.msra.mxu0 0.0
    %96 = vmatpush.msra.mxu0 0.0
    %97 = vmatpush.msra.mxu0 0.0
    %98 = vmatpush.msra.mxu0 %v81
    %99 = vmatpush.msra.mxu0 %v80
    %100 = vmatpush.msra.mxu0 %v79
    %101 = vmatpush.msra.mxu0 %v78
    %102 = vmatpush.msra.mxu0 %v77
    %103 = vmatpush.msra.mxu0 %v76
    %104 = vmatpush.msra.mxu0 %v75
    %105 = vmatpush.msra.mxu0 %v74
    %106 = vmatmul.f32.gmra.mxu0 %v88
    %v107 = vpop.f32.mrf.mxu0
    %v108 = vadd.f32 %v84, %v107
    %109 = vdwg.mxu0
    %v110 = vtanh.pop %v108
    %v111 = vld [vmem:[%s5] sm:$0xff]
    %v112 = vld [vmem:[%s5 + $0x8] sm:$0xff]
    %v113 = vld [vmem:[%s5 + $0x10] sm:$0xff]
    %v114 = vld [vmem:[%s5 + $0x18] sm:$0xff]
    %v115 = vld [vmem:[%s5 + $0x20] sm:$0xff]
    %v116 = vld [vmem:[%s5 + $0x28] sm:$0xff]
    %v117 = vld [vmem:[%s5 + $0x30] sm:$0xff]
    %v118 = vld [vmem:[%s5 + $0x38] sm:$0xff]
    %v119 = vld [vmem:[%s6] sm:$0x1]
    %v121 = vperm.slane %v119, 0
    %v124 = vsel %vm86, %v110, 0
    %126 = vmatpush.msra.mxu0 0.0
    %127 = vmatpush.msra.mxu0 0.0
    %128 = vmatpush.msra.mxu0 0.0
    %129 = vmatpush.msra.mxu0 0.0
    %130 = vmatpush.msra.mxu0 0.0
    %131 = vmatpush.msra.mxu0 0.0
    %132 = vmatpush.msra.mxu0 0.0
    %133 = vmatpush.msra.mxu0 0.0
    %134 = vmatpush.msra.mxu0 %v118
    %135 = vmatpush.msra.mxu0 %v117
    %136 = vmatpush.msra.mxu0 %v116
    %137 = vmatpush.msra.mxu0 %v115
    %138 = vmatpush.msra.mxu0 %v114
    %139 = vmatpush.msra.mxu0 %v113
    %140 = vmatpush.msra.mxu0 %v112
    %141 = vmatpush.msra.mxu0 %v111
    %142 = vmatmul.f32.gmra.mxu0 %v124
    %v143 = vpop.f32.mrf.mxu0
    %v144 = vadd.f32 %v121, %v143
    %145 = vdwg.mxu0
    %v146 = vtanh.pop %v144
    %vm147 = vcmask 39936
    %148 = vst.msk [vmem:[#allocation2] sm:$0xff] %vm147, %v146
    // Predicated region
    $region30: #{encoder_forward.1} parent=1 // pred_check
      _
    $region31: #{encoder_forward.1} parent=1 // pred_check_branch
      %150 = sbr.rel (0) target = $region33
    $region32: #{encoder_forward.1} parent=1 // pred_region
      %152 = vsyncadd [#allocation3], 0
      %s154 = sshll.u32 [#allocation2], 4
      %s155 = int_to_ptr.vmem [resolvable:$true] %s154
      %s156 = sshll.u32 %s7, 4
      %s157 = int_to_ptr.hbm [resolvable:$true] %s156
      %159 = dma.vmem_to_hbm [thread:$0]  %s155, 128, %s157, [#allocation3]
    $region33: #{encoder_forward.1} parent=1 // pred_fallthru
      _
    // Predicated region
    $region34: #{encoder_forward.1} parent=1 // pred_check
      _
    $region35: #{encoder_forward.1} parent=1 // pred_check_branch
      %161 = sbr.rel (0) target = $region37
    $region36: #{encoder_forward.1} parent=1 // pred_region
      %163 = dma.done [#allocation3], 128
    $region37: #{encoder_forward.1} parent=1 // pred_fallthru
      _
    %164 = vsyncpa [#allocation3], 1

</llo_original>
